<compile_context>
chip_gen: v6e
topology: v6e:2x2x1
jax: 0.10.0
libtpu: 0.0.40
codegen_flags: <defaults>
</compile_context>

<pallas_src>
import functools

import jax
import jax.numpy as jnp
from jax.experimental import pallas as pl
from jax.experimental.pallas import tpu as pltpu

FEATURE_DIM = 8
NUM_LEVELS = 12
NUM_SIGNALS = 4                            # x, y, z, x+y+z
NUM_FEATURES = FEATURE_DIM * NUM_LEVELS    # 96
IN_DIM = NUM_FEATURES + 3                  # 99
HIDDEN = 64
OUT_DIM = 4
PACK_ROWS = 6                              # [x, y, z, dx, dy, dz]

NUM_ANCHORS = 4                            # direct sin/cos at levels 0, 3, 6, 9
DOUBLINGS = 3                              # each anchor covers levels 3a+{0,1,2}
ANCHOR_SCALES = (1.0, 8.0, 64.0, 512.0)    # 2^(3a)

assert NUM_ANCHORS * DOUBLINGS == NUM_LEVELS
assert NUM_SIGNALS * 2 * NUM_LEVELS == NUM_FEATURES


def _round_up(x, m):
    return (x + m - 1) // m * m


def _choose_tile(mp, tm):
    """Largest lane tile (multiple of 128) that divides mp, <= tm, and leaves
    >= 8 grid steps so both v7x TensorCores stay busy *and* pipelined."""
    cap = max(128, min(tm, _round_up(-(-mp // 8), 128)))
    q = mp // 128
    best = 1
    for d in range(1, cap // 128 + 1):
        if q % d == 0:
            best = d
    return 128 * best


# ----------------------------------------------------------------------------
# Fused kernel: sinusoidal encode + view-dir concat + 3-layer MLP + heads
# ----------------------------------------------------------------------------
def _fused_renderer_kernel(pts_ref, w1_ref, b1_ref, w2_ref, b2_ref,
                           w3_ref, b3_ref, out_ref):
    """One lane-tile of points (points on lanes, channels on sublanes).

    pts_ref: (6, tile) f32, rows = [x, y, z, dx, dy, dz]
    out_ref: (4, tile) f32, rows = [r, g, b, density]
    """
    bf16 = jnp.bfloat16

    xyz = pts_ref[0:3, :]                                          # (3, tile)
    ssum = pts_ref[0:1, :] + pts_ref[1:2, :] + pts_ref[2:3, :]     # x+y+z
    sig = jnp.concatenate([xyz, ssum], axis=0)                     # (4, tile)

    # Anchor phases (levels 0, 3, 6, 9 for every signal); row = 4*a + g.
    phase = jnp.concatenate([sig * s for s in ANCHOR_SCALES], axis=0)  # (16, tile)

    # Direct transcendentals only at the anchors (32 rows/point instead of 96),
    # then two double-angle steps: sin(2p)=2 s c, cos(2p)=1-2 s^2.
    s0 = jnp.sin(phase)
    c0 = jnp.cos(phase)
    s1 = 2.0 * s0 * c0
    c1 = 1.0 - 2.0 * s0 * s0
    s2 = 2.0 * s1 * c1
    c2 = 1.0 - 2.0 * s1 * s1

    dirs = pts_ref[3:6, :]                                         # (3, tile)

    # One (99, tile) bf16 feature slab; every 16-row block lands on a bf16
    # sublane-tile boundary (offsets 0,16,...,80,96), so the concat is cheap.
    feat = jnp.concatenate(
        [s0.astype(bf16), s1.astype(bf16), s2.astype(bf16),
         c0.astype(bf16), c1.astype(bf16), c2.astype(bf16),
         dirs.astype(bf16)], axis=0)                               # (99, tile)

    # Single fused layer-1 matmul (K=99) + hidden layers; f32 accumulation.
    acc = jnp.dot(w1_ref[...], feat, preferred_element_type=jnp.float32)
    h1 = jnp.maximum(acc + b1_ref[...], 0.0).astype(bf16)          # (64, tile)
    h2 = jnp.maximum(
        jnp.dot(w2_ref[...], h1, preferred_element_type=jnp.float32) + b2_ref[...],
        0.0).astype(bf16)                                          # (64, tile)
    raw = jnp.dot(w3_ref[...], h2, preferred_element_type=jnp.float32) + b3_ref[...]

    # Split head: sigmoid only where needed (rgb), relu on density.
    out_ref[0:3, :] = jax.nn.sigmoid(raw[0:3, :])
    out_ref[3:4, :] = jnp.maximum(raw[3:4, :], 0.0)


@functools.partial(jax.jit, static_argnames=("tm",))
def cnc_renderer_forward_packed(pts, kparams, *, tm=8192):
    """Fused encoder + MLP on an already lane-packed point slab.

    pts: (6, Mp) f32 with Mp % 128 == 0, rows [x, y, z, dx, dy, dz].
    Returns (4, Mp) f32, rows [r, g, b, density].  No wrapper-side repacks:
    producers/consumers that keep this layout pay zero extra HBM passes.
    """
    rows, mp = pts.shape
    assert rows == PACK_ROWS and mp % 128 == 0
    tile = _choose_tile(mp, tm)
    grid = (mp // tile,)

    def const_spec(shape):
        return pl.BlockSpec(shape, lambda i: (0,) * len(shape))

    cost = pl.CostEstimate(
        flops=2 * mp * (IN_DIM * HIDDEN + HIDDEN * HIDDEN + HIDDEN * OUT_DIM),
        transcendentals=mp * (2 * NUM_ANCHORS * NUM_SIGNALS + 3),
        bytes_accessed=int(mp * (PACK_ROWS + OUT_DIM) * 4 + 32_000),
    )

    return pl.pallas_call(
        _fused_renderer_kernel,
        out_shape=jax.ShapeDtypeStruct((OUT_DIM, mp), jnp.float32),
        grid_spec=pltpu.PrefetchScalarGridSpec(
            num_scalar_prefetch=0,
            grid=grid,
            in_specs=[
                pl.BlockSpec((PACK_ROWS, tile), lambda i: (0, i)),   # points
                const_spec((HIDDEN, IN_DIM)),                        # W1^T (permuted, bf16)
                const_spec((HIDDEN, 1)),                             # b1
                const_spec((HIDDEN, HIDDEN)),                        # W2^T (bf16)
                const_spec((HIDDEN, 1)),                             # b2
                const_spec((OUT_DIM, HIDDEN)),                       # W3^T (bf16)
                const_spec((OUT_DIM, 1)),                            # b3
            ],
            out_specs=pl.BlockSpec((OUT_DIM, tile), lambda i: (0, i)),
        ),
        compiler_params=pltpu.CompilerParams(
            dimension_semantics=("parallel",),
            vmem_limit_bytes=32 * 1024 * 1024,   # ~10 MiB actual; fits v7x 64 MiB
        ),
        cost_estimate=cost,
    )(pts, kparams["w1"], kparams["b1"], kparams["w2"], kparams["b2"],
      kparams["w3"], kparams["b3"])


@functools.partial(jax.jit, static_argnames=("tm",))
def cnc_renderer_forward(coords, view_dirs, kparams, *, tm=8192):
    """Module-compatible interface mirroring CNCRenderer.forward.

    coords, view_dirs: (M, 3) f32.  Returns {"rgb": (M,3), "density": (M,1)}.
    The (M,3)->(6,Mp) pack and (4,Mp)->(M,*) unpack are interface plumbing
    (one fused XLA pass each); keep the packed layout end-to-end and call
    cnc_renderer_forward_packed directly to avoid them.
    """
    if view_dirs is None:
        view_dirs = jnp.zeros_like(coords)
    M = coords.shape[0]
    mp = _round_up(M, 128)
    pts = jnp.concatenate([coords, view_dirs], axis=-1).T          # (6, M)
    pts = jnp.pad(pts, ((0, 0), (0, mp - M)))
    out = cnc_renderer_forward_packed(pts, kparams, tm=tm)         # (4, mp)
    out = out[:, :M]
    return {"rgb": out[:3].T, "density": out[3:].T}


# ----------------------------------------------------------------------------
# Parameter construction / packing
# ----------------------------------------------------------------------------
def init_mlp_params(key):
    """Deterministic Kaiming-uniform-ish init, weights stored as (in, out)."""
    k1, k2, k3, k4, k5, k6 = jax.random.split(key, 6)

    def uni(k, shape, fan_in):
        bound = 1.0 / jnp.sqrt(fan_in)
        return jax.random.uniform(k, shape, jnp.float32, -bound, bound)

    w1 = uni(k1, (IN_DIM, HIDDEN), IN_DIM)
    b1 = uni(k2, (1, HIDDEN), IN_DIM)
    w2 = uni(k3, (HIDDEN, HIDDEN), HIDDEN)
    b2 = uni(k4, (1, HIDDEN), HIDDEN)
    w3 = uni(k5, (HIDDEN, OUT_DIM), HIDDEN)
    b3 = uni(k6, (1, OUT_DIM), HIDDEN)
    return w1, b1, w2, b2, w3, b3


def _w1_row_permutation():
    """Kernel feature-row order -> original encoder feature index.

    Kernel rows: six 16-row blocks [s0, s1, s2, c0, c1, c2]; within a block
    row = 4*anchor + signal, level = 3*anchor + doubling.
    Encoder order (synthetic_encoder): per signal, 12 sines then 12 cosines,
    levels 0..11.
    """
    perm = []
    for r in range(NUM_FEATURES):
        blk, within = divmod(r, NUM_ANCHORS * NUM_SIGNALS)
        trig, j = (0, blk) if blk < DOUBLINGS else (1, blk - DOUBLINGS)
        a, g = divmod(within, NUM_SIGNALS)
        level = DOUBLINGS * a + j
        perm.append(g * (2 * NUM_LEVELS) + trig * NUM_LEVELS + level)
    return jnp.asarray(perm, dtype=jnp.int32)


def pack_params(params):
    """Repack (in,out) f32 params into the fused kernel's transposed layout.

    W1's 96 feature rows are permuted to match the in-kernel feature-slab row
    order and fused with the 3 view-dir rows into one (64, 99) bf16 matrix;
    biases stay f32 column vectors.
    """
    w1, b1, w2, b2, w3, b3 = params
    perm = _w1_row_permutation()
    w1_feat = w1[:NUM_FEATURES][perm]                               # (96, 64)
    w1_dir = w1[NUM_FEATURES:]                                      # (3, 64)
    w1_k = jnp.concatenate([w1_feat, w1_dir], axis=0).T.astype(jnp.bfloat16)
    return {
        "w1": w1_k,                                                 # (64, 99)
        "b1": b1.reshape(HIDDEN, 1),
        "w2": w2.T.astype(jnp.bfloat16),                            # (64, 64)
        "b2": b2.reshape(HIDDEN, 1),
        "w3": w3.T.astype(jnp.bfloat16),                            # (4, 64)
        "b3": b3.reshape(OUT_DIM, 1),
    }


# ----------------------------------------------------------------------------
# Pure-JAX reference (matches the kernel math: bf16 matmul operands, f32 acc)
# ----------------------------------------------------------------------------
def synthetic_encoder(coords):
    """Deterministic stand-in for the external hash-grid encoder.

    coords: (M, 3) -> (M, 96).  For each signal v in [x, y, z, x+y+z]:
    12 sines over the 2^k frequency ladder, then 12 cosines.
    """
    x, y, z = coords[:, 0:1], coords[:, 1:2], coords[:, 2:3]
    freqs = 2.0 ** jnp.arange(NUM_LEVELS, dtype=jnp.float32)        # (12,)
    feats = []
    for v in (x, y, z, x + y + z):
        phase = v * freqs                                           # (M, 12)
        feats.append(jnp.sin(phase))
        feats.append(jnp.cos(phase))
    return jnp.concatenate(feats, axis=-1)                          # (M, 96)


def reference_forward(coords, view_dirs, params):
    w1, b1, w2, b2, w3, b3 = params
    f = jnp.concatenate([synthetic_encoder(coords), view_dirs], axis=-1)  # (M, 99)
    fb = f.astype(jnp.bfloat16)
    w1b, w2b, w3b = (w.astype(jnp.bfloat16) for w in (w1, w2, w3))
    h1 = jnp.maximum(jnp.dot(fb, w1b, preferred_element_type=jnp.float32) + b1, 0.0)
    h2 = jnp.maximum(
        jnp.dot(h1.astype(jnp.bfloat16), w2b, preferred_element_type=jnp.float32) + b2,
        0.0)
    raw = jnp.dot(h2.astype(jnp.bfloat16), w3b, preferred_element_type=jnp.float32) + b3
    return {"rgb": jax.nn.sigmoid(raw[:, :3]),
            "density": jnp.maximum(raw[:, 3:], 0.0)}


if __name__ == "__main__":
    key = jax.random.PRNGKey(0)
    k_params, k_coords, k_dirs = jax.random.split(key, 3)

    M = 1000  # deliberately NOT a multiple of 128 (exercises the padding path)
    coords = jax.random.uniform(k_coords, (M, 3), jnp.float32, -1.0, 1.0)
    view_dirs = jax.random.normal(k_dirs, (M, 3), jnp.float32)
    view_dirs = view_dirs / jnp.linalg.norm(view_dirs, axis=-1, keepdims=True)

    params = init_mlp_params(k_params)
    kparams = pack_params(params)

    out = cnc_renderer_forward(coords, view_dirs, kparams)
    jax.block_until_ready(out["rgb"])
    jax.block_until_ready(out["density"])

    ref = reference_forward(coords, view_dirs, params)
    assert out["rgb"].shape == (M, 3) and out["density"].shape == (M, 1)
    assert jnp.allclose(out["rgb"], ref["rgb"], atol=1e-2, rtol=1e-2)
    assert jnp.allclose(out["density"], ref["density"], atol=1e-2, rtol=1e-2)

    print("KERNEL_OK")
</pallas_src>

<mosaic_0001>
module attributes {stable_mosaic.version = 11 : i64} {
  func.func @_fused_renderer_kernel(%arg0: i32, %arg1: memref<6x128xf32, #tpu.memory_space<vmem>>, %arg2: memref<64x99xbf16, #tpu.memory_space<vmem>>, %arg3: memref<64x1xf32, #tpu.memory_space<vmem>>, %arg4: memref<64x64xbf16, #tpu.memory_space<vmem>>, %arg5: memref<64x1xf32, #tpu.memory_space<vmem>>, %arg6: memref<4x64xbf16, #tpu.memory_space<vmem>>, %arg7: memref<4x1xf32, #tpu.memory_space<vmem>>, %arg8: memref<4x128xf32, #tpu.memory_space<vmem>>) attributes {dimension_semantics = [#tpu.dimension_semantics<parallel>], iteration_bounds = array<i64: 8>, scalar_prefetch = 0 : i64, scratch_operands = 0 : i64, tpu.core_type = #tpu.core_type<tc>, window_params = [{transform_indices = @transform_0, window_bounds = array<i64: 6, 128>}, {pipeline_mode = #tpu.pipeline_mode<synchronous>, transform_indices = @transform_1, window_bounds = array<i64: 64, 99>}, {pipeline_mode = #tpu.pipeline_mode<synchronous>, transform_indices = @transform_2, window_bounds = array<i64: 64, 1>}, {pipeline_mode = #tpu.pipeline_mode<synchronous>, transform_indices = @transform_3, window_bounds = array<i64: 64, 64>}, {pipeline_mode = #tpu.pipeline_mode<synchronous>, transform_indices = @transform_4, window_bounds = array<i64: 64, 1>}, {pipeline_mode = #tpu.pipeline_mode<synchronous>, transform_indices = @transform_5, window_bounds = array<i64: 4, 64>}, {pipeline_mode = #tpu.pipeline_mode<synchronous>, transform_indices = @transform_6, window_bounds = array<i64: 4, 1>}, {transform_indices = @transform_7, window_bounds = array<i64: 4, 128>}]} {
    %c0 = arith.constant 0 : index
    %c0_0 = arith.constant 0 : index
    %0 = vector.load %arg1[%c0, %c0_0] : memref<6x128xf32, #tpu.memory_space<vmem>>, vector<3x128xf32>
    %c0_1 = arith.constant 0 : index
    %c0_2 = arith.constant 0 : index
    %1 = vector.load %arg1[%c0_1, %c0_2] : memref<6x128xf32, #tpu.memory_space<vmem>>, vector<1x128xf32>
    %c1 = arith.constant 1 : index
    %c0_3 = arith.constant 0 : index
    %2 = vector.load %arg1[%c1, %c0_3] : memref<6x128xf32, #tpu.memory_space<vmem>>, vector<1x128xf32>
    %3 = arith.addf %1, %2 : vector<1x128xf32>
    %c2 = arith.constant 2 : index
    %c0_4 = arith.constant 0 : index
    %4 = vector.load %arg1[%c2, %c0_4] : memref<6x128xf32, #tpu.memory_space<vmem>>, vector<1x128xf32>
    %5 = arith.addf %3, %4 : vector<1x128xf32>
    %6 = tpu.concatenate %0, %5 in 0 : vector<3x128xf32>, vector<1x128xf32> -> vector<4x128xf32>
    %cst = arith.constant 1.000000e+00 : f32
    %7 = vector.broadcast %cst : f32 to vector<4x128xf32>
    %8 = arith.mulf %6, %7 : vector<4x128xf32>
    %cst_5 = arith.constant 8.000000e+00 : f32
    %9 = vector.broadcast %cst_5 : f32 to vector<4x128xf32>
    %10 = arith.mulf %6, %9 : vector<4x128xf32>
    %cst_6 = arith.constant 6.400000e+01 : f32
    %11 = vector.broadcast %cst_6 : f32 to vector<4x128xf32>
    %12 = arith.mulf %6, %11 : vector<4x128xf32>
    %cst_7 = arith.constant 5.120000e+02 : f32
    %13 = vector.broadcast %cst_7 : f32 to vector<4x128xf32>
    %14 = arith.mulf %6, %13 : vector<4x128xf32>
    %15 = tpu.concatenate %8, %10, %12, %14 in 0 : vector<4x128xf32>, vector<4x128xf32>, vector<4x128xf32>, vector<4x128xf32> -> vector<16x128xf32>
    %16 = math.sin %15 : vector<16x128xf32>
    %17 = math.cos %15 : vector<16x128xf32>
    %cst_8 = arith.constant 2.000000e+00 : f32
    %18 = vector.broadcast %cst_8 : f32 to vector<16x128xf32>
    %19 = arith.mulf %18, %16 : vector<16x128xf32>
    %20 = arith.mulf %19, %17 : vector<16x128xf32>
    %cst_9 = arith.constant 2.000000e+00 : f32
    %21 = vector.broadcast %cst_9 : f32 to vector<16x128xf32>
    %22 = arith.mulf %21, %16 : vector<16x128xf32>
    %23 = arith.mulf %22, %16 : vector<16x128xf32>
    %cst_10 = arith.constant 1.000000e+00 : f32
    %24 = vector.broadcast %cst_10 : f32 to vector<16x128xf32>
    %25 = arith.subf %24, %23 : vector<16x128xf32>
    %cst_11 = arith.constant 2.000000e+00 : f32
    %26 = vector.broadcast %cst_11 : f32 to vector<16x128xf32>
    %27 = arith.mulf %26, %20 : vector<16x128xf32>
    %28 = arith.mulf %27, %25 : vector<16x128xf32>
    %cst_12 = arith.constant 2.000000e+00 : f32
    %29 = vector.broadcast %cst_12 : f32 to vector<16x128xf32>
    %30 = arith.mulf %29, %20 : vector<16x128xf32>
    %31 = arith.mulf %30, %20 : vector<16x128xf32>
    %cst_13 = arith.constant 1.000000e+00 : f32
    %32 = vector.broadcast %cst_13 : f32 to vector<16x128xf32>
    %33 = arith.subf %32, %31 : vector<16x128xf32>
    %c3 = arith.constant 3 : index
    %c0_14 = arith.constant 0 : index
    %34 = vector.load %arg1[%c3, %c0_14] : memref<6x128xf32, #tpu.memory_space<vmem>>, vector<3x128xf32>
    %35 = arith.truncf %16 : vector<16x128xf32> to vector<16x128xbf16>
    %36 = arith.truncf %20 : vector<16x128xf32> to vector<16x128xbf16>
    %37 = arith.truncf %28 : vector<16x128xf32> to vector<16x128xbf16>
    %38 = arith.truncf %17 : vector<16x128xf32> to vector<16x128xbf16>
    %39 = arith.truncf %25 : vector<16x128xf32> to vector<16x128xbf16>
    %40 = arith.truncf %33 : vector<16x128xf32> to vector<16x128xbf16>
    %41 = arith.truncf %34 : vector<3x128xf32> to vector<3x128xbf16>
    %42 = tpu.concatenate %35, %36, %37, %38, %39, %40, %41 in 0 : vector<16x128xbf16>, vector<16x128xbf16>, vector<16x128xbf16>, vector<16x128xbf16>, vector<16x128xbf16>, vector<16x128xbf16>, vector<3x128xbf16> -> vector<99x128xbf16>
    %c0_15 = arith.constant 0 : index
    %c0_16 = arith.constant 0 : index
    %43 = vector.load %arg2[%c0_15, %c0_16] : memref<64x99xbf16, #tpu.memory_space<vmem>>, vector<64x99xbf16>
    %cst_17 = arith.constant dense<0.000000e+00> : vector<64x128xf32>
    %44 = tpu.matmul %43, %42, %cst_17 {dimension_numbers = #tpu.dot_dimension_numbers<[1], [0], [0], [1], [0, 0, 1, 1], [], []>} : vector<64x99xbf16>, vector<99x128xbf16>, vector<64x128xf32> -> vector<64x128xf32>
    %c0_18 = arith.constant 0 : index
    %c0_19 = arith.constant 0 : index
    %45 = vector.load %arg3[%c0_18, %c0_19] : memref<64x1xf32, #tpu.memory_space<vmem>>, vector<64x1xf32>
    %46 = vector.broadcast %45 : vector<64x1xf32> to vector<64x128xf32>
    %47 = arith.addf %44, %46 : vector<64x128xf32>
    %cst_20 = arith.constant 0.000000e+00 : f32
    %48 = vector.broadcast %cst_20 : f32 to vector<64x128xf32>
    %49 = arith.maximumf %47, %48 : vector<64x128xf32>
    %50 = arith.truncf %49 : vector<64x128xf32> to vector<64x128xbf16>
    %c0_21 = arith.constant 0 : index
    %c0_22 = arith.constant 0 : index
    %51 = vector.load %arg4[%c0_21, %c0_22] : memref<64x64xbf16, #tpu.memory_space<vmem>>, vector<64x64xbf16>
    %cst_23 = arith.constant dense<0.000000e+00> : vector<64x128xf32>
    %52 = tpu.matmul %51, %50, %cst_23 {dimension_numbers = #tpu.dot_dimension_numbers<[1], [0], [0], [1], [0, 0, 1, 1], [], []>} : vector<64x64xbf16>, vector<64x128xbf16>, vector<64x128xf32> -> vector<64x128xf32>
    %c0_24 = arith.constant 0 : index
    %c0_25 = arith.constant 0 : index
    %53 = vector.load %arg5[%c0_24, %c0_25] : memref<64x1xf32, #tpu.memory_space<vmem>>, vector<64x1xf32>
    %54 = vector.broadcast %53 : vector<64x1xf32> to vector<64x128xf32>
    %55 = arith.addf %52, %54 : vector<64x128xf32>
    %cst_26 = arith.constant 0.000000e+00 : f32
    %56 = vector.broadcast %cst_26 : f32 to vector<64x128xf32>
    %57 = arith.maximumf %55, %56 : vector<64x128xf32>
    %58 = arith.truncf %57 : vector<64x128xf32> to vector<64x128xbf16>
    %c0_27 = arith.constant 0 : index
    %c0_28 = arith.constant 0 : index
    %59 = vector.load %arg6[%c0_27, %c0_28] : memref<4x64xbf16, #tpu.memory_space<vmem>>, vector<4x64xbf16>
    %cst_29 = arith.constant dense<0.000000e+00> : vector<4x128xf32>
    %60 = tpu.matmul %59, %58, %cst_29 {dimension_numbers = #tpu.dot_dimension_numbers<[1], [0], [0], [1], [0, 0, 1, 1], [], []>} : vector<4x64xbf16>, vector<64x128xbf16>, vector<4x128xf32> -> vector<4x128xf32>
    %c0_30 = arith.constant 0 : index
    %c0_31 = arith.constant 0 : index
    %61 = vector.load %arg7[%c0_30, %c0_31] : memref<4x1xf32, #tpu.memory_space<vmem>>, vector<4x1xf32>
    %62 = vector.broadcast %61 : vector<4x1xf32> to vector<4x128xf32>
    %63 = arith.addf %60, %62 : vector<4x128xf32>
    %64 = vector.extract_strided_slice %63 {offsets = [0, 0], sizes = [3, 128], strides = [1, 1]} : vector<4x128xf32> to vector<3x128xf32>
    %65 = arith.negf %64 : vector<3x128xf32>
    %66 = math.exp %65 : vector<3x128xf32>
    %cst_32 = arith.constant 1.000000e+00 : f32
    %67 = vector.broadcast %cst_32 : f32 to vector<3x128xf32>
    %68 = arith.addf %67, %66 : vector<3x128xf32>
    %69 = arith.divf %67, %68 : vector<3x128xf32>
    %c0_33 = arith.constant 0 : index
    %c0_34 = arith.constant 0 : index
    %70 = vector.load %arg8[%c0_33, %c0_34] : memref<4x128xf32, #tpu.memory_space<vmem>>, vector<3x128xf32>
    tpu.vector_store %arg8[%c0_33, %c0_34], %69 {strides = array<i32>} : memref<4x128xf32, #tpu.memory_space<vmem>>, vector<3x128xf32>,
    %71 = vector.extract_strided_slice %63 {offsets = [3, 0], sizes = [1, 128], strides = [1, 1]} : vector<4x128xf32> to vector<1x128xf32>
    %cst_35 = arith.constant 0.000000e+00 : f32
    %72 = vector.broadcast %cst_35 : f32 to vector<1x128xf32>
    %73 = arith.maximumf %71, %72 : vector<1x128xf32>
    %c3_36 = arith.constant 3 : index
    %c0_37 = arith.constant 0 : index
    %74 = vector.load %arg8[%c3_36, %c0_37] : memref<4x128xf32, #tpu.memory_space<vmem>>, vector<1x128xf32>
    tpu.vector_store %arg8[%c3_36, %c0_37], %73 {strides = array<i32>} : memref<4x128xf32, #tpu.memory_space<vmem>>, vector<1x128xf32>,
    return
  }
  func.func @transform_0(%arg0: i32) -> (i32, i32) {
    %c0_i32 = arith.constant 0 : i32
    %c0_i32_0 = arith.constant 0 : i32
    return %c0_i32, %arg0 : i32, i32
  }
  func.func @transform_1(%arg0: i32) -> (i32, i32) {
    %c0_i32 = arith.constant 0 : i32
    %c0_i32_0 = arith.constant 0 : i32
    %c0_i32_1 = arith.constant 0 : i32
    return %c0_i32, %c0_i32_0 : i32, i32
  }
  func.func @transform_2(%arg0: i32) -> (i32, i32) {
    %c0_i32 = arith.constant 0 : i32
    %c0_i32_0 = arith.constant 0 : i32
    %c0_i32_1 = arith.constant 0 : i32
    return %c0_i32, %c0_i32_0 : i32, i32
  }
  func.func @transform_3(%arg0: i32) -> (i32, i32) {
    %c0_i32 = arith.constant 0 : i32
    %c0_i32_0 = arith.constant 0 : i32
    %c0_i32_1 = arith.constant 0 : i32
    return %c0_i32, %c0_i32_0 : i32, i32
  }
  func.func @transform_4(%arg0: i32) -> (i32, i32) {
    %c0_i32 = arith.constant 0 : i32
    %c0_i32_0 = arith.constant 0 : i32
    %c0_i32_1 = arith.constant 0 : i32
    return %c0_i32, %c0_i32_0 : i32, i32
  }
  func.func @transform_5(%arg0: i32) -> (i32, i32) {
    %c0_i32 = arith.constant 0 : i32
    %c0_i32_0 = arith.constant 0 : i32
    %c0_i32_1 = arith.constant 0 : i32
    return %c0_i32, %c0_i32_0 : i32, i32
  }
  func.func @transform_6(%arg0: i32) -> (i32, i32) {
    %c0_i32 = arith.constant 0 : i32
    %c0_i32_0 = arith.constant 0 : i32
    %c0_i32_1 = arith.constant 0 : i32
    return %c0_i32, %c0_i32_0 : i32, i32
  }
  func.func @transform_7(%arg0: i32) -> (i32, i32) {
    %c0_i32 = arith.constant 0 : i32
    %c0_i32_0 = arith.constant 0 : i32
    return %c0_i32, %arg0 : i32, i32
  }
}

</mosaic_0001>

<llo_original>
// kernel: cnc_renderer_forward_packed.1
$region0: #{cnc_renderer_forward_packed.1}
  #allocation0 [shape = 'u32[]', space=smem, size = 0x4, offset = 0x4, fixed_abs, tag = 'smem constant byte address 0x4 - core index']
  #allocation1 [shape = 'u32[144,128]{1,0:T(1,128)}', space=vmem, size = 0x12000, scoped, tag = 'internal scratch']
  %s0 = inlined_call_operand.vmem [shape: f32[6,1024], index: 0, kind: input, shape index: {}]
  %s1 = inlined_call_operand.vmem [shape: bf16[64,99], index: 1, kind: input, shape index: {}]
  %s2 = inlined_call_operand.vmem [shape: f32[64,1], index: 2, kind: input, shape index: {}]
  %s3 = inlined_call_operand.vmem [shape: bf16[64,64], index: 3, kind: input, shape index: {}]
  %s4 = inlined_call_operand.vmem [shape: f32[64,1], index: 4, kind: input, shape index: {}]
  %s5 = inlined_call_operand.vmem [shape: bf16[4,64], index: 5, kind: input, shape index: {}]
  %s6 = inlined_call_operand.vmem [shape: f32[4,1], index: 6, kind: input, shape index: {}]
  %s7 = inlined_call_operand.hbm [shape: f32[4,1024], index: 7, kind: output, shape index: {}]
  %s8 = sld [smem:[#allocation0]]
  $region61: #{cnc_renderer_forward_packed.1} parent=0
    _
  %s10 = ssub.s32 1, %s8
  %s11 = scalar_select 0, %s10, %s8
  $region1: #{cnc_renderer_forward_packed.1} parent=0
    #allocation2 [shape = 'u8[4096]{0}', space=vmem, size = 0x1000, scoped, tag = 'output window, operand 0']
    #allocation3 [shape = 's32[2]{0}', space=sflag, size = 0x8, scoped, tag = 'scoped memory for cnc_renderer_forward_packed.1']
    %12 = vsyncpa [#allocation3], 0
    %s13 = scalar_lea.sflag [#allocation3], 1
    %14 = vsyncpa %s13, 0
    loop: start=0, step=1, limit=10
    $region2: #{cnc_renderer_forward_packed.1} parent=1 // loop_pre_header
      _
    $region3: #{cnc_renderer_forward_packed.1} parent=1 // loop_header
      %s16 = sphi 0, %s20
      %p17 = scmp.ge.s32.totalorder %s16, 10
      %s26 = sphi 0, %s28
      %s29 = sphi 0, %s26
      %s30 = sphi 0, %s29
      %s46 = sphi 0, %s30
      %s50 = sphi 0, %s50
      %s52 = sphi 0, %s50
      %s53 = sphi 0, %s52
      %s67 = sphi 0, %s53
      %s71 = sphi 0, %s71
      %s73 = sphi 0, %s71
      %s74 = sphi 0, %s73
      %s88 = sphi 0, %s74
      %s92 = sphi 0, %s92
      %s94 = sphi 0, %s92
      %s95 = sphi 0, %s94
      %s109 = sphi 0, %s95
      %s113 = sphi 0, %s113
      %s115 = sphi 0, %s113
      %s116 = sphi 0, %s115
      %s130 = sphi 0, %s116
      %s134 = sphi 0, %s134
      %s136 = sphi 0, %s134
      %s137 = sphi 0, %s136
      %s151 = sphi 0, %s137
      %s155 = sphi 0, %s155
      %s157 = sphi 0, %s155
      %s158 = sphi 0, %s157
      %s172 = sphi 0, %s158
      %s178 = sphi 0, %s180
      %s181 = sphi 0, %s178
      %s182 = sphi 0, %s181
      %s198 = sphi 0, %s182
    $region4: #{cnc_renderer_forward_packed.1} parent=1 // loop_header_branch
      %19 = sbr.rel (%p17) target = $region8
    $region5: #{cnc_renderer_forward_packed.1} parent=1 // loop_body
      %s21 = ssub.s32 %s16, 1
      %s22 = ssub.s32 %s16, 2
      %s23 = sadd.s32 %s16, 1
      %s24 = ssub.s32 %s16, %s23
      %p25 = scmp.eq.s32.totalorder %s24, 0
      %s27 = sadd.s32 %s26, 1
      %s28 = scalar_select %p25, %s26, %s27
      %p31 = pneg %p25
      %p32 = scmp.eq.s32.totalorder %s16, 7
      %p33 = por %p31, %p32
      %p34 = scmp.ne.s32.totalorder %s26, %s29
      %p35 = scmp.eq.s32.totalorder %s16, 0
      %p36 = por %p34, %p35
      %p37 = scmp.ne.s32.totalorder %s26, %s29
      %p38 = scmp.eq.s32.totalorder %s21, 7
      %p39 = por %p37, %p38
      %p40 = scmp.ne.s32.totalorder %s29, %s30
      %p41 = scmp.eq.s32.totalorder %s21, 0
      %p42 = por %p40, %p41
      %p43 = scmp.ne.s32.totalorder %s29, %s30
      %p44 = scmp.eq.s32.totalorder %s22, 7
      %p45 = por %p43, %p44
      %p47 = scmp.ne.s32.totalorder %s30, %s46
      %p48 = scmp.eq.s32.totalorder %s22, 0
      %p49 = por %p47, %p48
      %s51 = sadd.s32 %s50, 1
      %p54 = scmp.eq.s32.totalorder %s16, 7
      %p55 = scmp.ne.s32.totalorder %s50, %s52
      %p56 = scmp.eq.s32.totalorder %s16, 0
      %p57 = por %p55, %p56
      %p58 = scmp.ne.s32.totalorder %s50, %s52
      %p59 = scmp.eq.s32.totalorder %s21, 7
      %p60 = por %p58, %p59
      %p61 = scmp.ne.s32.totalorder %s52, %s53
      %p62 = scmp.eq.s32.totalorder %s21, 0
      %p63 = por %p61, %p62
      %p64 = scmp.ne.s32.totalorder %s52, %s53
      %p65 = scmp.eq.s32.totalorder %s22, 7
      %p66 = por %p64, %p65
      %p68 = scmp.ne.s32.totalorder %s53, %s67
      %p69 = scmp.eq.s32.totalorder %s22, 0
      %p70 = por %p68, %p69
      %s72 = sadd.s32 %s71, 1
      %p75 = scmp.eq.s32.totalorder %s16, 7
      %p76 = scmp.ne.s32.totalorder %s71, %s73
      %p77 = scmp.eq.s32.totalorder %s16, 0
      %p78 = por %p76, %p77
      %p79 = scmp.ne.s32.totalorder %s71, %s73
      %p80 = scmp.eq.s32.totalorder %s21, 7
      %p81 = por %p79, %p80
      %p82 = scmp.ne.s32.totalorder %s73, %s74
      %p83 = scmp.eq.s32.totalorder %s21, 0
      %p84 = por %p82, %p83
      %p85 = scmp.ne.s32.totalorder %s73, %s74
      %p86 = scmp.eq.s32.totalorder %s22, 7
      %p87 = por %p85, %p86
      %p89 = scmp.ne.s32.totalorder %s74, %s88
      %p90 = scmp.eq.s32.totalorder %s22, 0
      %p91 = por %p89, %p90
      %s93 = sadd.s32 %s92, 1
      %p96 = scmp.eq.s32.totalorder %s16, 7
      %p97 = scmp.ne.s32.totalorder %s92, %s94
      %p98 = scmp.eq.s32.totalorder %s16, 0
      %p99 = por %p97, %p98
      %p100 = scmp.ne.s32.totalorder %s92, %s94
      %p101 = scmp.eq.s32.totalorder %s21, 7
      %p102 = por %p100, %p101
      %p103 = scmp.ne.s32.totalorder %s94, %s95
      %p104 = scmp.eq.s32.totalorder %s21, 0
      %p105 = por %p103, %p104
      %p106 = scmp.ne.s32.totalorder %s94, %s95
      %p107 = scmp.eq.s32.totalorder %s22, 7
      %p108 = por %p106, %p107
      %p110 = scmp.ne.s32.totalorder %s95, %s109
      %p111 = scmp.eq.s32.totalorder %s22, 0
      %p112 = por %p110, %p111
      %s114 = sadd.s32 %s113, 1
      %p117 = scmp.eq.s32.totalorder %s16, 7
      %p118 = scmp.ne.s32.totalorder %s113, %s115
      %p119 = scmp.eq.s32.totalorder %s16, 0
      %p120 = por %p118, %p119
      %p121 = scmp.ne.s32.totalorder %s113, %s115
      %p122 = scmp.eq.s32.totalorder %s21, 7
      %p123 = por %p121, %p122
      %p124 = scmp.ne.s32.totalorder %s115, %s116
      %p125 = scmp.eq.s32.totalorder %s21, 0
      %p126 = por %p124, %p125
      %p127 = scmp.ne.s32.totalorder %s115, %s116
      %p128 = scmp.eq.s32.totalorder %s22, 7
      %p129 = por %p127, %p128
      %p131 = scmp.ne.s32.totalorder %s116, %s130
      %p132 = scmp.eq.s32.totalorder %s22, 0
      %p133 = por %p131, %p132
      %s135 = sadd.s32 %s134, 1
      %p138 = scmp.eq.s32.totalorder %s16, 7
      %p139 = scmp.ne.s32.totalorder %s134, %s136
      %p140 = scmp.eq.s32.totalorder %s16, 0
      %p141 = por %p139, %p140
      %p142 = scmp.ne.s32.totalorder %s134, %s136
      %p143 = scmp.eq.s32.totalorder %s21, 7
      %p144 = por %p142, %p143
      %p145 = scmp.ne.s32.totalorder %s136, %s137
      %p146 = scmp.eq.s32.totalorder %s21, 0
      %p147 = por %p145, %p146
      %p148 = scmp.ne.s32.totalorder %s136, %s137
      %p149 = scmp.eq.s32.totalorder %s22, 7
      %p150 = por %p148, %p149
      %p152 = scmp.ne.s32.totalorder %s137, %s151
      %p153 = scmp.eq.s32.totalorder %s22, 0
      %p154 = por %p152, %p153
      %s156 = sadd.s32 %s155, 1
      %p159 = scmp.eq.s32.totalorder %s16, 7
      %p160 = scmp.ne.s32.totalorder %s155, %s157
      %p161 = scmp.eq.s32.totalorder %s16, 0
      %p162 = por %p160, %p161
      %p163 = scmp.ne.s32.totalorder %s155, %s157
      %p164 = scmp.eq.s32.totalorder %s21, 7
      %p165 = por %p163, %p164
      %p166 = scmp.ne.s32.totalorder %s157, %s158
      %p167 = scmp.eq.s32.totalorder %s21, 0
      %p168 = por %p166, %p167
      %p169 = scmp.ne.s32.totalorder %s157, %s158
      %p170 = scmp.eq.s32.totalorder %s22, 7
      %p171 = por %p169, %p170
      %p173 = scmp.ne.s32.totalorder %s158, %s172
      %p174 = scmp.eq.s32.totalorder %s22, 0
      %p175 = por %p173, %p174
      %s176 = ssub.s32 %s16, %s23
      %p177 = scmp.eq.s32.totalorder %s176, 0
      %s179 = sadd.s32 %s178, 1
      %s180 = scalar_select %p177, %s178, %s179
      %p183 = pneg %p177
      %p184 = scmp.eq.s32.totalorder %s16, 7
      %p185 = por %p183, %p184
      %p186 = scmp.ne.s32.totalorder %s178, %s181
      %p187 = scmp.eq.s32.totalorder %s16, 0
      %p188 = por %p186, %p187
      %p189 = scmp.ne.s32.totalorder %s178, %s181
      %p190 = scmp.eq.s32.totalorder %s21, 7
      %p191 = por %p189, %p190
      %p192 = scmp.ne.s32.totalorder %s181, %s182
      %p193 = scmp.eq.s32.totalorder %s21, 0
      %p194 = por %p192, %p193
      %p195 = scmp.ne.s32.totalorder %s181, %s182
      %p196 = scmp.eq.s32.totalorder %s22, 7
      %p197 = por %p195, %p196
      %p199 = scmp.ne.s32.totalorder %s182, %s198
      %p200 = scmp.eq.s32.totalorder %s22, 0
      %p201 = por %p199, %p200
      %p202 = scmp.le.s32.totalorder 1, %s16
      %p203 = scmp.lt.s32.totalorder %s16, 9
      %p204 = pnand %p202, %p203
      %p205 = pneg %p204
      // Predicated region
      $region9: #{cnc_renderer_forward_packed.1} parent=5 // pred_check
        _
      $region10: #{cnc_renderer_forward_packed.1} parent=5 // pred_check_branch
        %207 = sbr.rel (%p204) target = $region12
      $region11: #{cnc_renderer_forward_packed.1} parent=5 // pred_region
        %s208 = ssub.s32 %s16, 1
        // Predicated region
        $region13: #{cnc_renderer_forward_packed.1} parent=11 // pred_check
          %p209 = pneg %p63
        $region14: #{cnc_renderer_forward_packed.1} parent=11 // pred_check_branch
          %211 = sbr.rel (%p209) target = $region16
        $region15: #{cnc_renderer_forward_packed.1} parent=11 // pred_region
          _
        $region16: #{cnc_renderer_forward_packed.1} parent=11 // pred_fallthru
          _
        // Predicated region
        $region17: #{cnc_renderer_forward_packed.1} parent=11 // pred_check
          %p212 = pneg %p84
        $region18: #{cnc_renderer_forward_packed.1} parent=11 // pred_check_branch
          %214 = sbr.rel (%p212) target = $region20
        $region19: #{cnc_renderer_forward_packed.1} parent=11 // pred_region
          _
        $region20: #{cnc_renderer_forward_packed.1} parent=11 // pred_fallthru
          _
        // Predicated region
        $region21: #{cnc_renderer_forward_packed.1} parent=11 // pred_check
          %p215 = pneg %p105
        $region22: #{cnc_renderer_forward_packed.1} parent=11 // pred_check_branch
          %217 = sbr.rel (%p215) target = $region24
        $region23: #{cnc_renderer_forward_packed.1} parent=11 // pred_region
          _
        $region24: #{cnc_renderer_forward_packed.1} parent=11 // pred_fallthru
          _
        // Predicated region
        $region25: #{cnc_renderer_forward_packed.1} parent=11 // pred_check
          %p218 = pneg %p126
        $region26: #{cnc_renderer_forward_packed.1} parent=11 // pred_check_branch
          %220 = sbr.rel (%p218) target = $region28
        $region27: #{cnc_renderer_forward_packed.1} parent=11 // pred_region
          _
        $region28: #{cnc_renderer_forward_packed.1} parent=11 // pred_fallthru
          _
        // Predicated region
        $region29: #{cnc_renderer_forward_packed.1} parent=11 // pred_check
          %p221 = pneg %p147
        $region30: #{cnc_renderer_forward_packed.1} parent=11 // pred_check_branch
          %223 = sbr.rel (%p221) target = $region32
        $region31: #{cnc_renderer_forward_packed.1} parent=11 // pred_region
          _
        $region32: #{cnc_renderer_forward_packed.1} parent=11 // pred_fallthru
          _
        // Predicated region
        $region33: #{cnc_renderer_forward_packed.1} parent=11 // pred_check
          %p224 = pneg %p168
        $region34: #{cnc_renderer_forward_packed.1} parent=11 // pred_check_branch
          %226 = sbr.rel (%p224) target = $region36
        $region35: #{cnc_renderer_forward_packed.1} parent=11 // pred_region
          _
        $region36: #{cnc_renderer_forward_packed.1} parent=11 // pred_fallthru
          _
      $region12: #{cnc_renderer_forward_packed.1} parent=5 // pred_fallthru
        _
      %p227 = scmp.lt.s32.totalorder %s16, 8
      // Predicated region
      $region37: #{cnc_renderer_forward_packed.1} parent=5 // pred_check
        %p228 = pneg %p227
      $region38: #{cnc_renderer_forward_packed.1} parent=5 // pred_check_branch
        %230 = sbr.rel (%p228) target = $region40
      $region39: #{cnc_renderer_forward_packed.1} parent=5 // pred_region
        // Predicated region
        $region41: #{cnc_renderer_forward_packed.1} parent=39 // pred_check
          %p231 = pneg %p36
        $region42: #{cnc_renderer_forward_packed.1} parent=39 // pred_check_branch
          %233 = sbr.rel (%p231) target = $region44
        $region43: #{cnc_renderer_forward_packed.1} parent=39 // pred_region
          %p234 = scmp.lt.s32.totalorder %s16, 7
          %s235 = scalar_select %p234, %s16, 7
          %s236 = smul.addr %s235, 8
          %s237 = scalar_lea.vmem %s0, %s236
        $region44: #{cnc_renderer_forward_packed.1} parent=39 // pred_fallthru
          _
      $region40: #{cnc_renderer_forward_packed.1} parent=5 // pred_fallthru
        _
      %p238 = scmp.le.s32.totalorder 1, %s16
      %p239 = scmp.lt.s32.totalorder %s16, 9
      %p240 = pnand %p238, %p239
      %p241 = pneg %p240
      // Predicated region
      $region45: #{cnc_renderer_forward_packed.1} parent=5 // pred_check
        _
      $region46: #{cnc_renderer_forward_packed.1} parent=5 // pred_check_branch
        %243 = sbr.rel (%p240) target = $region48
      $region47: #{cnc_renderer_forward_packed.1} parent=5 // pred_region
        %s244 = ssub.s32 %s16, 1
        %p245 = scmp.lt.s32.totalorder %s21, 7
        %s246 = scalar_select %p245, %s21, 7
        %s247 = smul.addr %s246, 8
        %s248 = scalar_lea.vmem %s0, %s247
        %p249 = pneg %p42
        %p250 = pneg %p39
        %p251 = pneg %p63
        %p252 = pneg %p60
        %p253 = pneg %p84
        %p254 = pneg %p81
        %p255 = pneg %p105
        %p256 = pneg %p102
        %p257 = pneg %p126
        %p258 = pneg %p123
        %p259 = pneg %p147
        %p260 = pneg %p144
        %p261 = pneg %p168
        %p262 = pneg %p165
        %p263 = pneg %p194
        %p264 = pneg %p191
        %s265 = sand.u32 %s181, 1
        %s266 = scalar_lea.sflag [#allocation3], %s265
        %s267 = sand.u32 %s181, 1
        %s268 = smul.addr %s267, 4
        %s269 = scalar_lea.vmem [#allocation2], %s268
        %p270 = scmp.lt.s32.totalorder %s21, 7
        %s271 = scalar_select %p270, %s21, 7
        %s272 = smul.addr %s271, 8
        %s273 = scalar_lea.vmem %s0, %s272
        %v275 = vld [vmem:[%s273] sm:$0x7]
        %v276 = vld [vmem:[%s273] sm:$0x1]
        %v277 = vld [vmem:[%s273 + $0x1] sm:$0x1]
        %v278 = vadd.f32 %v276, %v277
        %v279 = vld [vmem:[%s273 + $0x2] sm:$0x1]
        %v280 = vadd.f32 %v278, %v279
        %v282 = vrot.slane %v280, 5
        %vm284 = vcmask 1042432
        %v285 = vsel %vm284, %v275, %v282
        %v286 = vmul.f32 %v285, 8.0
        %v287 = vmul.f32 %v285, 64.0
        %v288 = vmul.f32 %v285, 512.0
        %v290 = vrot.slane %v286, 4
        %v293 = vrot.slane %v288, 4
        %vm295 = vcmask 1043456
        %v296 = vsel %vm295, %v285, %v290
        %v297 = vsel %vm295, %v287, %v293
        %v298 = vand.u32 2147483647, %v296
        %vm299 = vcmp.le.f32.partialorder %v298, 0.7853982
        %vm300 = vcmp.lt.s32.totalorder %v296, 0
        %v301 = vand.u32 %v296, 2139095040
        %v302 = vshrl.u32 %v301, 23
        %v303 = vsub.s32 %v302, 127
        %v304 = vand.u32 2147483647, %v296
        %v305 = vand.u32 %v304, 8388607
        %v306 = vor.u32 %v305, 8388608
        %v307 = vsub.s32 0, %v306
        %v308 = vadd.s32 %v303, 1
        %vm309 = vcmp.gt.s32.totalorder %v308, 0
        %v310 = vsel %vm309, %v308, 0
        %v311 = vshrl.u32 %v310, 5
        %v312 = vand.u32 %v310, 31
        %v313 = vsub.s32 32, %v312
        %v314 = vshrl.u32 683565275, %v313
        %v315 = vshll.u32 683565275, %v312
        %v316 = vshrl.u32 2475754826, %v313
        %v317 = vor.u32 %v315, %v316
        %v318 = vshll.u32 2475754826, %v312
        %v319 = vshrl.u32 2131351028, %v313
        %v320 = vor.u32 %v318, %v319
        %v321 = vshll.u32 2131351028, %v312
        %v322 = vshrl.u32 2102212464, %v313
        %v323 = vor.u32 %v321, %v322
        %v324 = vshll.u32 2102212464, %v312
        %v325 = vshrl.u32 920167782, %v313
        %v326 = vor.u32 %v324, %v325
        %v327 = vshll.u32 920167782, %v312
        %v328 = vshrl.u32 1326507024, %v313
        %v329 = vor.u32 %v327, %v328
        %vm330 = vcmp.lt.s32.totalorder %v311, 1
        %vm331 = vcmp.lt.s32.totalorder %v311, 2
        %vm332 = vcmp.lt.s32.totalorder %v311, 3
        %vm333 = vcmp.lt.s32.totalorder %v311, 4
        %v334 = vsel %vm330, %v314, %v317
        %v335 = vsel %vm333, %v323, 2102212464
        %v336 = vsel %vm332, %v320, %v335
        %v337 = vsel %vm331, %v334, %v336
        %v338 = vsel %vm330, %v317, %v320
        %v339 = vsel %vm333, %v326, 920167782
        %v340 = vsel %vm332, %v323, %v339
        %v341 = vsel %vm331, %v338, %v340
        %v342 = vsel %vm330, %v320, %v323
        %v343 = vsel %vm333, %v329, 1326507024
        %v344 = vsel %vm332, %v326, %v343
        %v345 = vsel %vm331, %v342, %v344
        %v346 = vshll.u32 %v306, 8
        %v347 = vmul.u32.u64.compose %v346, %v345
        %v348 = vextract.low.u32 %v347
        %v349 = vextract.high.u32 %v347
        %v350 = vmul.u32.u64.compose %v346, %v341
        %v351 = vextract.low.u32 %v350
        %v352 = vextract.high.u32 %v350
        %v353 = vmul.u32 %v346, %v337
        %v354 = vadd.s32 %v349, %v351
        %vm355 = vc.u32 %v349, %v351
        %v356 = vadd.s32 %v352, 1
        %v357 = vsel %vm355, %v356, %v352
        %v358 = vadd.s32 %v353, %v357
        %v359 = vadd.s32 %v358, 536870912
        %v360 = vshrl.u32 %v359, 30
        %v361 = vshll.u32 %v360, 30
        %v362 = vsub.s32 %v358, %v361
        %vm363 = vcmp.lt.s32.totalorder %v362, 0
        %v364 = vsub.s32 0, %v362
        %v365 = vsel %vm363, %v364, %v362
        %v366 = vclz %v365
        %v367 = vsub.s32 %v366, 2
        %vm368 = vcmp.gt.s32.totalorder 0, %v367
        %v369 = vsel %vm368, 0, %v367
        %v370 = vsub.s32 32, %v369
        %v371 = vshll.u32 %v362, %v369
        %v372 = vshrl.u32 %v354, %v370
        %v373 = vor.u32 %v371, %v372
        %v374 = vsub.s32 4294967266, %v369
        %v375 = vadd.s32 %v374, 127
        %v376 = vshll.u32 %v375, 23
        %v377 = vor.u32 4788187, %v376
        %v378 = vand.u32 2147483647, %v377
        %v380 = vcvt.s32.f32 %v373
        %v381 = vmul.f32 %v380, %v378
        %v382 = vxor.u32 %v381, 2147483648
        %v383 = vsel %vm300, %v382, %v381
        %v384 = vsub.s32 4, %v360
        %v385 = vsel %vm300, %v384, %v360
        %v386 = vsel %vm299, %v296, %v383
        %v387 = vsel %vm299, 0, %v385
        %v388 = vcosq.f32.pop %v386
        %v389 = vsinq.f32.pop %v386
        %vm390 = vweird.f32 %v296
        %v391 = vadd.s32 %v387, 3
        %v392 = vand.u32 %v391, 3
        %vm393 = vcmp.lt.s32.totalorder %v392, 2
        %vm394 = vcmp.eq.s32.totalorder %v392, 0
        %v395 = vxor.u32 %v389, 2147483648
        %v396 = vsel %vm394, %v388, %v395
        %vm397 = vcmp.eq.s32.totalorder %v392, 2
        %v398 = vxor.u32 %v388, 2147483648
        %v399 = vsel %vm397, %v398, %v389
        %v400 = vsel %vm393, %v396, %v399
        %v401 = vsel %vm390, nan, %v400
        %v402 = vand.u32 2147483647, %v297
        %vm403 = vcmp.le.f32.partialorder %v402, 0.7853982
        %vm404 = vcmp.lt.s32.totalorder %v297, 0
        %v405 = vand.u32 %v297, 2139095040
        %v406 = vshrl.u32 %v405, 23
        %v407 = vsub.s32 %v406, 127
        %v408 = vand.u32 2147483647, %v297
        %v409 = vand.u32 %v408, 8388607
        %v410 = vor.u32 %v409, 8388608
        %v411 = vsub.s32 0, %v410
        %v412 = vadd.s32 %v407, 1
        %vm413 = vcmp.gt.s32.totalorder %v412, 0
        %v414 = vsel %vm413, %v412, 0
        %v415 = vshrl.u32 %v414, 5
        %v416 = vand.u32 %v414, 31
        %v417 = vsub.s32 32, %v416
        %v418 = vshrl.u32 683565275, %v417
        %v419 = vshll.u32 683565275, %v416
        %v420 = vshrl.u32 2475754826, %v417
        %v421 = vor.u32 %v419, %v420
        %v422 = vshll.u32 2475754826, %v416
        %v423 = vshrl.u32 2131351028, %v417
        %v424 = vor.u32 %v422, %v423
        %v425 = vshll.u32 2131351028, %v416
        %v426 = vshrl.u32 2102212464, %v417
        %v427 = vor.u32 %v425, %v426
        %v428 = vshll.u32 2102212464, %v416
        %v429 = vshrl.u32 920167782, %v417
        %v430 = vor.u32 %v428, %v429
        %v431 = vshll.u32 920167782, %v416
        %v432 = vshrl.u32 1326507024, %v417
        %v433 = vor.u32 %v431, %v432
        %vm434 = vcmp.lt.s32.totalorder %v415, 1
        %vm435 = vcmp.lt.s32.totalorder %v415, 2
        %vm436 = vcmp.lt.s32.totalorder %v415, 3
        %vm437 = vcmp.lt.s32.totalorder %v415, 4
        %v438 = vsel %vm434, %v418, %v421
        %v439 = vsel %vm437, %v427, 2102212464
        %v440 = vsel %vm436, %v424, %v439
        %v441 = vsel %vm435, %v438, %v440
        %v442 = vsel %vm434, %v421, %v424
        %v443 = vsel %vm437, %v430, 920167782
        %v444 = vsel %vm436, %v427, %v443
        %v445 = vsel %vm435, %v442, %v444
        %v446 = vsel %vm434, %v424, %v427
        %v447 = vsel %vm437, %v433, 1326507024
        %v448 = vsel %vm436, %v430, %v447
        %v449 = vsel %vm435, %v446, %v448
        %v450 = vshll.u32 %v410, 8
        %v451 = vmul.u32.u64.compose %v450, %v449
        %v452 = vextract.low.u32 %v451
        %v453 = vextract.high.u32 %v451
        %v454 = vmul.u32.u64.compose %v450, %v445
        %v455 = vextract.low.u32 %v454
        %v456 = vextract.high.u32 %v454
        %v457 = vmul.u32 %v450, %v441
        %v458 = vadd.s32 %v453, %v455
        %vm459 = vc.u32 %v453, %v455
        %v460 = vadd.s32 %v456, 1
        %v461 = vsel %vm459, %v460, %v456
        %v462 = vadd.s32 %v457, %v461
        %v463 = vadd.s32 %v462, 536870912
        %v464 = vshrl.u32 %v463, 30
        %v465 = vshll.u32 %v464, 30
        %v466 = vsub.s32 %v462, %v465
        %vm467 = vcmp.lt.s32.totalorder %v466, 0
        %v468 = vsub.s32 0, %v466
        %v469 = vsel %vm467, %v468, %v466
        %v470 = vclz %v469
        %v471 = vsub.s32 %v470, 2
        %vm472 = vcmp.gt.s32.totalorder 0, %v471
        %v473 = vsel %vm472, 0, %v471
        %v474 = vsub.s32 32, %v473
        %v475 = vshll.u32 %v466, %v473
        %v476 = vshrl.u32 %v458, %v474
        %v477 = vor.u32 %v475, %v476
        %v478 = vsub.s32 4294967266, %v473
        %v479 = vadd.s32 %v478, 127
        %v480 = vshll.u32 %v479, 23
        %v481 = vor.u32 4788187, %v480
        %v482 = vand.u32 2147483647, %v481
        %v484 = vcvt.s32.f32 %v477
        %v485 = vmul.f32 %v484, %v482
        %v486 = vxor.u32 %v485, 2147483648
        %v487 = vsel %vm404, %v486, %v485
        %v488 = vsub.s32 4, %v464
        %v489 = vsel %vm404, %v488, %v464
        %v490 = vsel %vm403, %v297, %v487
        %v491 = vsel %vm403, 0, %v489
        %v492 = vcosq.f32.pop %v490
        %v493 = vsinq.f32.pop %v490
        %vm494 = vweird.f32 %v297
        %v495 = vadd.s32 %v491, 3
        %v496 = vand.u32 %v495, 3
        %vm497 = vcmp.lt.s32.totalorder %v496, 2
        %vm498 = vcmp.eq.s32.totalorder %v496, 0
        %v499 = vxor.u32 %v493, 2147483648
        %v500 = vsel %vm498, %v492, %v499
        %vm501 = vcmp.eq.s32.totalorder %v496, 2
        %v502 = vxor.u32 %v492, 2147483648
        %v503 = vsel %vm501, %v502, %v493
        %v504 = vsel %vm497, %v500, %v503
        %v505 = vsel %vm494, nan, %v504
        %v506 = vand.u32 2147483647, %v296
        %vm507 = vcmp.le.f32.partialorder %v506, 0.7853982
        %vm508 = vcmp.lt.s32.totalorder %v296, 0
        %v509 = vand.u32 %v296, 2139095040
        %v510 = vshrl.u32 %v509, 23
        %v511 = vsub.s32 %v510, 127
        %v512 = vand.u32 2147483647, %v296
        %v513 = vand.u32 %v512, 8388607
        %v514 = vor.u32 %v513, 8388608
        %v515 = vsub.s32 0, %v514
        %v516 = vadd.s32 %v511, 1
        %vm517 = vcmp.gt.s32.totalorder %v516, 0
        %v518 = vsel %vm517, %v516, 0
        %v519 = vshrl.u32 %v518, 5
        %v520 = vand.u32 %v518, 31
        %v521 = vsub.s32 32, %v520
        %v522 = vshrl.u32 683565275, %v521
        %v523 = vshll.u32 683565275, %v520
        %v524 = vshrl.u32 2475754826, %v521
        %v525 = vor.u32 %v523, %v524
        %v526 = vshll.u32 2475754826, %v520
        %v527 = vshrl.u32 2131351028, %v521
        %v528 = vor.u32 %v526, %v527
        %v529 = vshll.u32 2131351028, %v520
        %v530 = vshrl.u32 2102212464, %v521
        %v531 = vor.u32 %v529, %v530
        %v532 = vshll.u32 2102212464, %v520
        %v533 = vshrl.u32 920167782, %v521
        %v534 = vor.u32 %v532, %v533
        %v535 = vshll.u32 920167782, %v520
        %v536 = vshrl.u32 1326507024, %v521
        %v537 = vor.u32 %v535, %v536
        %vm538 = vcmp.lt.s32.totalorder %v519, 1
        %vm539 = vcmp.lt.s32.totalorder %v519, 2
        %vm540 = vcmp.lt.s32.totalorder %v519, 3
        %vm541 = vcmp.lt.s32.totalorder %v519, 4
        %v542 = vsel %vm538, %v522, %v525
        %v543 = vsel %vm541, %v531, 2102212464
        %v544 = vsel %vm540, %v528, %v543
        %v545 = vsel %vm539, %v542, %v544
        %v546 = vsel %vm538, %v525, %v528
        %v547 = vsel %vm541, %v534, 920167782
        %v548 = vsel %vm540, %v531, %v547
        %v549 = vsel %vm539, %v546, %v548
        %v550 = vsel %vm538, %v528, %v531
        %v551 = vsel %vm541, %v537, 1326507024
        %v552 = vsel %vm540, %v534, %v551
        %v553 = vsel %vm539, %v550, %v552
        %v554 = vshll.u32 %v514, 8
        %v555 = vmul.u32.u64.compose %v554, %v553
        %v556 = vextract.low.u32 %v555
        %v557 = vextract.high.u32 %v555
        %v558 = vmul.u32.u64.compose %v554, %v549
        %v559 = vextract.low.u32 %v558
        %v560 = vextract.high.u32 %v558
        %v561 = vmul.u32 %v554, %v545
        %v562 = vadd.s32 %v557, %v559
        %vm563 = vc.u32 %v557, %v559
        %v564 = vadd.s32 %v560, 1
        %v565 = vsel %vm563, %v564, %v560
        %v566 = vadd.s32 %v561, %v565
        %v567 = vadd.s32 %v566, 536870912
        %v568 = vshrl.u32 %v567, 30
        %v569 = vshll.u32 %v568, 30
        %v570 = vsub.s32 %v566, %v569
        %vm571 = vcmp.lt.s32.totalorder %v570, 0
        %v572 = vsub.s32 0, %v570
        %v573 = vsel %vm571, %v572, %v570
        %v574 = vclz %v573
        %v575 = vsub.s32 %v574, 2
        %vm576 = vcmp.gt.s32.totalorder 0, %v575
        %v577 = vsel %vm576, 0, %v575
        %v578 = vsub.s32 32, %v577
        %v579 = vshll.u32 %v570, %v577
        %v580 = vshrl.u32 %v562, %v578
        %v581 = vor.u32 %v579, %v580
        %v582 = vsub.s32 4294967266, %v577
        %v583 = vadd.s32 %v582, 127
        %v584 = vshll.u32 %v583, 23
        %v585 = vor.u32 4788187, %v584
        %v586 = vand.u32 2147483647, %v585
        %v588 = vcvt.s32.f32 %v581
        %v589 = vmul.f32 %v588, %v586
        %v590 = vxor.u32 %v589, 2147483648
        %v591 = vsel %vm508, %v590, %v589
        %v592 = vsub.s32 4, %v568
        %v593 = vsel %vm508, %v592, %v568
        %v594 = vsel %vm507, %v296, %v591
        %v595 = vsel %vm507, 0, %v593
        %v596 = vcosq.f32.pop %v594
        %v597 = vsinq.f32.pop %v594
        %vm598 = vweird.f32 %v296
        %v599 = vand.u32 %v595, 3
        %vm600 = vcmp.lt.s32.totalorder %v599, 2
        %vm601 = vcmp.eq.s32.totalorder %v599, 0
        %v602 = vxor.u32 %v597, 2147483648
        %v603 = vsel %vm601, %v596, %v602
        %vm604 = vcmp.eq.s32.totalorder %v599, 2
        %v605 = vxor.u32 %v596, 2147483648
        %v606 = vsel %vm604, %v605, %v597
        %v607 = vsel %vm600, %v603, %v606
        %v608 = vsel %vm598, nan, %v607
        %v609 = vand.u32 2147483647, %v297
        %vm610 = vcmp.le.f32.partialorder %v609, 0.7853982
        %vm611 = vcmp.lt.s32.totalorder %v297, 0
        %v612 = vand.u32 %v297, 2139095040
        %v613 = vshrl.u32 %v612, 23
        %v614 = vsub.s32 %v613, 127
        %v615 = vand.u32 2147483647, %v297
        %v616 = vand.u32 %v615, 8388607
        %v617 = vor.u32 %v616, 8388608
        %v618 = vsub.s32 0, %v617
        %v619 = vadd.s32 %v614, 1
        %vm620 = vcmp.gt.s32.totalorder %v619, 0
        %v621 = vsel %vm620, %v619, 0
        %v622 = vshrl.u32 %v621, 5
        %v623 = vand.u32 %v621, 31
        %v624 = vsub.s32 32, %v623
        %v625 = vshrl.u32 683565275, %v624
        %v626 = vshll.u32 683565275, %v623
        %v627 = vshrl.u32 2475754826, %v624
        %v628 = vor.u32 %v626, %v627
        %v629 = vshll.u32 2475754826, %v623
        %v630 = vshrl.u32 2131351028, %v624
        %v631 = vor.u32 %v629, %v630
        %v632 = vshll.u32 2131351028, %v623
        %v633 = vshrl.u32 2102212464, %v624
        %v634 = vor.u32 %v632, %v633
        %v635 = vshll.u32 2102212464, %v623
        %v636 = vshrl.u32 920167782, %v624
        %v637 = vor.u32 %v635, %v636
        %v638 = vshll.u32 920167782, %v623
        %v639 = vshrl.u32 1326507024, %v624
        %v640 = vor.u32 %v638, %v639
        %vm641 = vcmp.lt.s32.totalorder %v622, 1
        %vm642 = vcmp.lt.s32.totalorder %v622, 2
        %vm643 = vcmp.lt.s32.totalorder %v622, 3
        %vm644 = vcmp.lt.s32.totalorder %v622, 4
        %v645 = vsel %vm641, %v625, %v628
        %v646 = vsel %vm644, %v634, 2102212464
        %v647 = vsel %vm643, %v631, %v646
        %v648 = vsel %vm642, %v645, %v647
        %v649 = vsel %vm641, %v628, %v631
        %v650 = vsel %vm644, %v637, 920167782
        %v651 = vsel %vm643, %v634, %v650
        %v652 = vsel %vm642, %v649, %v651
        %v653 = vsel %vm641, %v631, %v634
        %v654 = vsel %vm644, %v640, 1326507024
        %v655 = vsel %vm643, %v637, %v654
        %v656 = vsel %vm642, %v653, %v655
        %v657 = vshll.u32 %v617, 8
        %v658 = vmul.u32.u64.compose %v657, %v656
        %v659 = vextract.low.u32 %v658
        %v660 = vextract.high.u32 %v658
        %v661 = vmul.u32.u64.compose %v657, %v652
        %v662 = vextract.low.u32 %v661
        %v663 = vextract.high.u32 %v661
        %v664 = vmul.u32 %v657, %v648
        %v665 = vadd.s32 %v660, %v662
        %vm666 = vc.u32 %v660, %v662
        %v667 = vadd.s32 %v663, 1
        %v668 = vsel %vm666, %v667, %v663
        %v669 = vadd.s32 %v664, %v668
        %v670 = vadd.s32 %v669, 536870912
        %v671 = vshrl.u32 %v670, 30
        %v672 = vshll.u32 %v671, 30
        %v673 = vsub.s32 %v669, %v672
        %vm674 = vcmp.lt.s32.totalorder %v673, 0
        %v675 = vsub.s32 0, %v673
        %v676 = vsel %vm674, %v675, %v673
        %v677 = vclz %v676
        %v678 = vsub.s32 %v677, 2
        %vm679 = vcmp.gt.s32.totalorder 0, %v678
        %v680 = vsel %vm679, 0, %v678
        %v681 = vsub.s32 32, %v680
        %v682 = vshll.u32 %v673, %v680
        %v683 = vshrl.u32 %v665, %v681
        %v684 = vor.u32 %v682, %v683
        %v685 = vsub.s32 4294967266, %v680
        %v686 = vadd.s32 %v685, 127
        %v687 = vshll.u32 %v686, 23
        %v688 = vor.u32 4788187, %v687
        %v689 = vand.u32 2147483647, %v688
        %v691 = vcvt.s32.f32 %v684
        %v692 = vmul.f32 %v691, %v689
        %v693 = vxor.u32 %v692, 2147483648
        %v694 = vsel %vm611, %v693, %v692
        %v695 = vsub.s32 4, %v671
        %v696 = vsel %vm611, %v695, %v671
        %v697 = vsel %vm610, %v297, %v694
        %v698 = vsel %vm610, 0, %v696
        %v699 = vcosq.f32.pop %v697
        %v700 = vsinq.f32.pop %v697
        %vm701 = vweird.f32 %v297
        %v702 = vand.u32 %v698, 3
        %vm703 = vcmp.lt.s32.totalorder %v702, 2
        %vm704 = vcmp.eq.s32.totalorder %v702, 0
        %v705 = vxor.u32 %v700, 2147483648
        %v706 = vsel %vm704, %v699, %v705
        %vm707 = vcmp.eq.s32.totalorder %v702, 2
        %v708 = vxor.u32 %v699, 2147483648
        %v709 = vsel %vm707, %v708, %v700
        %v710 = vsel %vm703, %v706, %v709
        %v711 = vsel %vm701, nan, %v710
        %v712 = vmul.f32 %v401, 2.0
        %v713 = vmul.f32 %v505, 2.0
        %v714 = vmul.f32 %v712, %v608
        %v715 = vmul.f32 %v713, %v711
        %v716 = vmul.f32 %v712, %v401
        %v717 = vmul.f32 %v713, %v505
        %v718 = vsub.f32 1.0, %v716
        %v719 = vsub.f32 1.0, %v717
        %v720 = vmul.f32 %v714, 2.0
        %v721 = vmul.f32 %v715, 2.0
        %v722 = vmul.f32 %v720, %v718
        %v723 = vmul.f32 %v721, %v719
        %v724 = vmul.f32 %v720, %v714
        %v725 = vmul.f32 %v721, %v715
        %v726 = vsub.f32 1.0, %v724
        %v727 = vsub.f32 1.0, %v725
        %v728 = vld [vmem:[%s273 + $0x3] sm:$0x7]
        %v729 = vpack.c.bf16 %v505, %v401
        %v730 = vpack.c.bf16 %v715, %v714
        %v731 = vpack.c.bf16 %v723, %v722
        %v732 = vpack.c.bf16 %v711, %v608
        %v733 = vpack.c.bf16 %v719, %v718
        %v734 = vpack.c.bf16 %v727, %v726
        %v735 = vpack.c.bf16 %v728, %v728
        %v736 = vld [vmem:[%s1] sm:$0xf]
        %v737 = vld [vmem:[%s1 + $0x4] sm:$0xf]
        %v738 = vld [vmem:[%s1 + $0x8] sm:$0xf]
        %v739 = vld [vmem:[%s1 + $0xc] sm:$0xf]
        %v740 = vld [vmem:[%s1 + $0x10] sm:$0xf]
        %v741 = vld [vmem:[%s1 + $0x14] sm:$0xf]
        %v742 = vld [vmem:[%s1 + $0x18] sm:$0xf]
        %v743 = vld [vmem:[%s1 + $0x1c] sm:$0xf]
        %v744 = vld [vmem:[%s2] sm:$0xff]
        %v745 = vld [vmem:[%s2 + $0x8] sm:$0xff]
        %v746 = vld [vmem:[%s2 + $0x10] sm:$0xff]
        %v747 = vld [vmem:[%s2 + $0x18] sm:$0xff]
        %v748 = vld [vmem:[%s2 + $0x20] sm:$0xff]
        %v749 = vld [vmem:[%s2 + $0x28] sm:$0xff]
        %v750 = vld [vmem:[%s2 + $0x30] sm:$0xff]
        %v751 = vld [vmem:[%s2 + $0x38] sm:$0xff]
        %753 = vset.pattern.permute.xlu0 0
        %754 = vperm.xlu0 %753, %v744
        %v755 = vpop.permute.xlu0 %754
        %758 = vset.pattern.permute.xlu0 0
        %759 = vperm.xlu0 %758, %v745
        %v760 = vpop.permute.xlu0 %759
        %763 = vset.pattern.permute.xlu0 0
        %764 = vperm.xlu0 %763, %v746
        %v765 = vpop.permute.xlu0 %764
        %768 = vset.pattern.permute.xlu0 0
        %769 = vperm.xlu0 %768, %v747
        %v770 = vpop.permute.xlu0 %769
        %773 = vset.pattern.permute.xlu0 0
        %774 = vperm.xlu0 %773, %v748
        %v775 = vpop.permute.xlu0 %774
        %778 = vset.pattern.permute.xlu0 0
        %779 = vperm.xlu0 %778, %v749
        %v780 = vpop.permute.xlu0 %779
        %783 = vset.pattern.permute.xlu0 0
        %784 = vperm.xlu0 %783, %v750
        %v785 = vpop.permute.xlu0 %784
        %788 = vset.pattern.permute.xlu0 0
        %789 = vperm.xlu0 %788, %v751
        %v790 = vpop.permute.xlu0 %789
        %v800 = vunpack.c.l.b16 %v736
        %v801 = vunpack.c.l.b16 %v737
        %v802 = vunpack.c.l.b16 %v738
        %v803 = vunpack.c.l.b16 %v739
        %v804 = vunpack.c.l.b16 %v740
        %v805 = vunpack.c.l.b16 %v741
        %v806 = vunpack.c.l.b16 %v742
        %v807 = vunpack.c.l.b16 %v743
        %v808 = vpack.c.b16 %v801, %v800
        %v809 = vpack.c.b16 %v803, %v802
        %v810 = vpack.c.b16 %v805, %v804
        %v811 = vpack.c.b16 %v807, %v806
        %vm812 = vcmask 809984
        %v814 = vsel %vm812, %v808, 0
        %v817 = vsel %vm812, %v809, 0
        %v820 = vsel %vm812, %v810, 0
        %v823 = vsel %vm812, %v811, 0
        %vm825 = vcmask 1040384
        %vm826 = vcmask 1041408
        %v827 = vsel %vm825, 4294967295, 65535
        %v828 = vsel %vm826, %v827, 0
        %v830 = vand.u32 %v735, %v828
        %832 = vmatprep.subr.bf16.mxu0 0
        %833 = vmatpush1.bf16.msra.mxu0 0
        %834 = vmatprep.subr.bf16.mxu0 0
        %835 = vmatpush1.bf16.msra.mxu0 %v830
        %836 = vmatprep.subr.bf16.mxu0 0
        %837 = vmatpush1.bf16.msra.mxu0 %v734
        %838 = vmatprep.subr.bf16.mxu0 0
        %839 = vmatpush1.bf16.msra.mxu0 %v733
        %840 = vmatprep.subr.bf16.mxu0 0
        %841 = vmatpush1.bf16.msra.mxu0 %v732
        %842 = vmatprep.subr.bf16.mxu0 0
        %843 = vmatpush1.bf16.msra.mxu0 %v731
        %844 = vmatprep.subr.bf16.mxu0 0
        %845 = vmatpush1.bf16.msra.mxu0 %v730
        %846 = vmatprep.subr.bf16.mxu0 0
        %847 = vmatpush1.bf16.msra.mxu0 %v729
        %848 = vmatprep.subr.bf16.mxu0 0
        %849 = vmatpush2.bf16.msra.mxu0 0
        %850 = vmatprep.subr.bf16.mxu0 0
        %851 = vmatpush2.bf16.msra.mxu0 0
        %852 = vmatprep.subr.bf16.mxu0 0
        %853 = vmatpush2.bf16.msra.mxu0 0
        %854 = vmatprep.subr.bf16.mxu0 0
        %855 = vmatpush2.bf16.msra.mxu0 0
        %856 = vmatprep.subr.bf16.mxu0 0
        %857 = vmatpush2.bf16.msra.mxu0 0
        %858 = vmatprep.subr.bf16.mxu0 0
        %859 = vmatpush2.bf16.msra.mxu0 0
        %860 = vmatprep.subr.bf16.mxu0 0
        %861 = vmatpush2.bf16.msra.mxu0 0
        %862 = vmatprep.subr.bf16.mxu0 0
        %863 = vmatpush2.bf16.msra.mxu0 0
        %864 = vmatprep.mubr.bf16.mxu0 0
        %865 = vmatmul.mubr.bf16.gmra.mxu0 %v814
        %v866 = vpop.f32.mrf.mxu0
        %v867 = vadd.f32 %v755, %v866
        %v868 = vpop.f32.mrf.mxu0
        %v869 = vpop.f32.mrf.mxu0
        %v870 = vadd.f32 %v760, %v869
        %v871 = vpop.f32.mrf.mxu0
        %872 = vmatprep.mubr.bf16.mxu0 0
        %873 = vmatmul.mubr.bf16.gmra.mxu0 %v817
        %v874 = vpop.f32.mrf.mxu0
        %v875 = vadd.f32 %v765, %v874
        %v876 = vpop.f32.mrf.mxu0
        %v877 = vpop.f32.mrf.mxu0
        %v878 = vadd.f32 %v770, %v877
        %v879 = vpop.f32.mrf.mxu0
        %880 = vmatprep.mubr.bf16.mxu0 0
        %881 = vmatmul.mubr.bf16.gmra.mxu0 %v820
        %v882 = vpop.f32.mrf.mxu0
        %v883 = vadd.f32 %v775, %v882
        %v884 = vpop.f32.mrf.mxu0
        %v885 = vpop.f32.mrf.mxu0
        %v886 = vadd.f32 %v780, %v885
        %v887 = vpop.f32.mrf.mxu0
        %888 = vmatprep.mubr.bf16.mxu0 0
        %889 = vmatmul.mubr.bf16.gmra.mxu0 %v823
        %v890 = vpop.f32.mrf.mxu0
        %v891 = vadd.f32 %v785, %v890
        %v892 = vpop.f32.mrf.mxu0
        %v893 = vpop.f32.mrf.mxu0
        %v894 = vadd.f32 %v790, %v893
        %v895 = vpop.f32.mrf.mxu0
        %896 = vdwg.mxu0
        %v897 = vmax.f32 %v867, 0.0
        %v898 = vmax.f32 %v870, 0.0
        %v899 = vmax.f32 %v875, 0.0
        %v900 = vmax.f32 %v878, 0.0
        %v901 = vmax.f32 %v883, 0.0
        %v902 = vmax.f32 %v886, 0.0
        %v903 = vmax.f32 %v891, 0.0
        %v904 = vmax.f32 %v894, 0.0
        %v905 = vpack.c.bf16 %v898, %v897
        %v906 = vpack.c.bf16 %v900, %v899
        %v907 = vpack.c.bf16 %v902, %v901
        %v908 = vpack.c.bf16 %v904, %v903
        %v909 = vld [vmem:[%s3] sm:$0xf]
        %v910 = vld [vmem:[%s3 + $0x4] sm:$0xf]
        %v911 = vld [vmem:[%s3 + $0x8] sm:$0xf]
        %v912 = vld [vmem:[%s3 + $0xc] sm:$0xf]
        %v913 = vld [vmem:[%s3 + $0x10] sm:$0xf]
        %v914 = vld [vmem:[%s3 + $0x14] sm:$0xf]
        %v915 = vld [vmem:[%s3 + $0x18] sm:$0xf]
        %v916 = vld [vmem:[%s3 + $0x1c] sm:$0xf]
        %v917 = vld [vmem:[%s4] sm:$0xff]
        %v918 = vld [vmem:[%s4 + $0x8] sm:$0xff]
        %v919 = vld [vmem:[%s4 + $0x10] sm:$0xff]
        %v920 = vld [vmem:[%s4 + $0x18] sm:$0xff]
        %v921 = vld [vmem:[%s4 + $0x20] sm:$0xff]
        %v922 = vld [vmem:[%s4 + $0x28] sm:$0xff]
        %v923 = vld [vmem:[%s4 + $0x30] sm:$0xff]
        %v924 = vld [vmem:[%s4 + $0x38] sm:$0xff]
        %926 = vset.pattern.permute.xlu0 0
        %927 = vperm.xlu0 %926, %v917
        %v928 = vpop.permute.xlu0 %927
        %931 = vset.pattern.permute.xlu0 0
        %932 = vperm.xlu0 %931, %v918
        %v933 = vpop.permute.xlu0 %932
        %936 = vset.pattern.permute.xlu0 0
        %937 = vperm.xlu0 %936, %v919
        %v938 = vpop.permute.xlu0 %937
        %941 = vset.pattern.permute.xlu0 0
        %942 = vperm.xlu0 %941, %v920
        %v943 = vpop.permute.xlu0 %942
        %946 = vset.pattern.permute.xlu0 0
        %947 = vperm.xlu0 %946, %v921
        %v948 = vpop.permute.xlu0 %947
        %951 = vset.pattern.permute.xlu0 0
        %952 = vperm.xlu0 %951, %v922
        %v953 = vpop.permute.xlu0 %952
        %956 = vset.pattern.permute.xlu0 0
        %957 = vperm.xlu0 %956, %v923
        %v958 = vpop.permute.xlu0 %957
        %961 = vset.pattern.permute.xlu0 0
        %962 = vperm.xlu0 %961, %v924
        %v963 = vpop.permute.xlu0 %962
        %v973 = vunpack.c.l.b16 %v909
        %v974 = vunpack.c.l.b16 %v910
        %v975 = vunpack.c.l.b16 %v911
        %v976 = vunpack.c.l.b16 %v912
        %v977 = vunpack.c.l.b16 %v913
        %v978 = vunpack.c.l.b16 %v914
        %v979 = vunpack.c.l.b16 %v915
        %v980 = vunpack.c.l.b16 %v916
        %v981 = vpack.c.b16 %v974, %v973
        %v982 = vpack.c.b16 %v976, %v975
        %v983 = vpack.c.b16 %v978, %v977
        %v984 = vpack.c.b16 %v980, %v979
        %vm985 = vcmask 523264
        %v987 = vsel %vm985, %v981, 0
        %v990 = vsel %vm985, %v982, 0
        %v993 = vsel %vm985, %v983, 0
        %v996 = vsel %vm985, %v984, 0
        %998 = vmatprep.subr.bf16.mxu0 0
        %999 = vmatpush1.bf16.msra.mxu0 0
        %1000 = vmatprep.subr.bf16.mxu0 0
        %1001 = vmatpush1.bf16.msra.mxu0 0
        %1002 = vmatprep.subr.bf16.mxu0 0
        %1003 = vmatpush1.bf16.msra.mxu0 0
        %1004 = vmatprep.subr.bf16.mxu0 0
        %1005 = vmatpush1.bf16.msra.mxu0 0
        %1006 = vmatprep.subr.bf16.mxu0 0
        %1007 = vmatpush1.bf16.msra.mxu0 %v908
        %1008 = vmatprep.subr.bf16.mxu0 0
        %1009 = vmatpush1.bf16.msra.mxu0 %v907
        %1010 = vmatprep.subr.bf16.mxu0 0
        %1011 = vmatpush1.bf16.msra.mxu0 %v906
        %1012 = vmatprep.subr.bf16.mxu0 0
        %1013 = vmatpush1.bf16.msra.mxu0 %v905
        %1014 = vmatprep.subr.bf16.mxu0 0
        %1015 = vmatpush2.bf16.msra.mxu0 0
        %1016 = vmatprep.subr.bf16.mxu0 0
        %1017 = vmatpush2.bf16.msra.mxu0 0
        %1018 = vmatprep.subr.bf16.mxu0 0
        %1019 = vmatpush2.bf16.msra.mxu0 0
        %1020 = vmatprep.subr.bf16.mxu0 0
        %1021 = vmatpush2.bf16.msra.mxu0 0
        %1022 = vmatprep.subr.bf16.mxu0 0
        %1023 = vmatpush2.bf16.msra.mxu0 0
        %1024 = vmatprep.subr.bf16.mxu0 0
        %1025 = vmatpush2.bf16.msra.mxu0 0
        %1026 = vmatprep.subr.bf16.mxu0 0
        %1027 = vmatpush2.bf16.msra.mxu0 0
        %1028 = vmatprep.subr.bf16.mxu0 0
        %1029 = vmatpush2.bf16.msra.mxu0 0
        %1030 = vmatprep.mubr.bf16.mxu0 0
        %1031 = vmatmul.mubr.bf16.gmra.mxu0 %v987
        %v1032 = vpop.f32.mrf.mxu0
        %v1033 = vadd.f32 %v928, %v1032
        %v1034 = vpop.f32.mrf.mxu0
        %v1035 = vpop.f32.mrf.mxu0
        %v1036 = vadd.f32 %v933, %v1035
        %v1037 = vpop.f32.mrf.mxu0
        %1038 = vmatprep.mubr.bf16.mxu0 0
        %1039 = vmatmul.mubr.bf16.gmra.mxu0 %v990
        %v1040 = vpop.f32.mrf.mxu0
        %v1041 = vadd.f32 %v938, %v1040
        %v1042 = vpop.f32.mrf.mxu0
        %v1043 = vpop.f32.mrf.mxu0
        %v1044 = vadd.f32 %v943, %v1043
        %v1045 = vpop.f32.mrf.mxu0
        %1046 = vmatprep.mubr.bf16.mxu0 0
        %1047 = vmatmul.mubr.bf16.gmra.mxu0 %v993
        %v1048 = vpop.f32.mrf.mxu0
        %v1049 = vadd.f32 %v948, %v1048
        %v1050 = vpop.f32.mrf.mxu0
        %v1051 = vpop.f32.mrf.mxu0
        %v1052 = vadd.f32 %v953, %v1051
        %v1053 = vpop.f32.mrf.mxu0
        %1054 = vmatprep.mubr.bf16.mxu0 0
        %1055 = vmatmul.mubr.bf16.gmra.mxu0 %v996
        %v1056 = vpop.f32.mrf.mxu0
        %v1057 = vadd.f32 %v958, %v1056
        %v1058 = vpop.f32.mrf.mxu0
        %v1059 = vpop.f32.mrf.mxu0
        %v1060 = vadd.f32 %v963, %v1059
        %v1061 = vpop.f32.mrf.mxu0
        %1062 = vdwg.mxu0
        %v1063 = vmax.f32 %v1033, 0.0
        %v1064 = vmax.f32 %v1036, 0.0
        %v1065 = vmax.f32 %v1041, 0.0
        %v1066 = vmax.f32 %v1044, 0.0
        %v1067 = vmax.f32 %v1049, 0.0
        %v1068 = vmax.f32 %v1052, 0.0
        %v1069 = vmax.f32 %v1057, 0.0
        %v1070 = vmax.f32 %v1060, 0.0
        %v1071 = vpack.c.bf16 %v1064, %v1063
        %v1072 = vpack.c.bf16 %v1066, %v1065
        %v1073 = vpack.c.bf16 %v1068, %v1067
        %v1074 = vpack.c.bf16 %v1070, %v1069
        %v1075 = vld [vmem:[%s5] sm:$0x3]
        %v1076 = vld [vmem:[%s6] sm:$0xf]
        %1078 = vset.pattern.permute.xlu0 0
        %1079 = vperm.xlu0 %1078, %v1076
        %v1080 = vpop.permute.xlu0 %1079
        %v1083 = vsel %vm985, %v1075, 0
        %1085 = vmatprep.subr.bf16.mxu0 0
        %1086 = vmatpush1.bf16.msra.mxu0 0
        %1087 = vmatprep.subr.bf16.mxu0 0
        %1088 = vmatpush1.bf16.msra.mxu0 0
        %1089 = vmatprep.subr.bf16.mxu0 0
        %1090 = vmatpush1.bf16.msra.mxu0 0
        %1091 = vmatprep.subr.bf16.mxu0 0
        %1092 = vmatpush1.bf16.msra.mxu0 0
        %1093 = vmatprep.subr.bf16.mxu0 0
        %1094 = vmatpush1.bf16.msra.mxu0 %v1074
        %1095 = vmatprep.subr.bf16.mxu0 0
        %1096 = vmatpush1.bf16.msra.mxu0 %v1073
        %1097 = vmatprep.subr.bf16.mxu0 0
        %1098 = vmatpush1.bf16.msra.mxu0 %v1072
        %1099 = vmatprep.subr.bf16.mxu0 0
        %1100 = vmatpush1.bf16.msra.mxu0 %v1071
        %1101 = vmatprep.subr.bf16.mxu0 0
        %1102 = vmatpush2.bf16.msra.mxu0 0
        %1103 = vmatprep.subr.bf16.mxu0 0
        %1104 = vmatpush2.bf16.msra.mxu0 0
        %1105 = vmatprep.subr.bf16.mxu0 0
        %1106 = vmatpush2.bf16.msra.mxu0 0
        %1107 = vmatprep.subr.bf16.mxu0 0
        %1108 = vmatpush2.bf16.msra.mxu0 0
        %1109 = vmatprep.subr.bf16.mxu0 0
        %1110 = vmatpush2.bf16.msra.mxu0 0
        %1111 = vmatprep.subr.bf16.mxu0 0
        %1112 = vmatpush2.bf16.msra.mxu0 0
        %1113 = vmatprep.subr.bf16.mxu0 0
        %1114 = vmatpush2.bf16.msra.mxu0 0
        %1115 = vmatprep.subr.bf16.mxu0 0
        %1116 = vmatpush2.bf16.msra.mxu0 0
        %1117 = vmatprep.mubr.bf16.mxu0 0
        %1118 = vmatmul.mubr.bf16.gmra.mxu0 %v1083
        %v1119 = vpop.f32.mrf.mxu0
        %v1120 = vadd.f32 %v1080, %v1119
        %v1121 = vpop.f32.mrf.mxu0
        %v1122 = vpop.f32.mrf.mxu0
        %v1123 = vpop.f32.mrf.mxu0
        %1124 = vdwg.mxu0
        %v1125 = vxor.u32 %v1120, 2147483648
        %v1126 = vmul.f32 %v1125, 1.442695
        %v1127 = vpow.pop %v1126
        %v1128 = vadd.f32 %v1127, 1.0
        %v1129 = vrcp.pop %v1128
        %v1130 = vmul.f32 1.0, %v1129
        %1131 = vst [vmem:[%s269] sm:$0x7] %v1130
        %v1132 = vmax.f32 %v1120, 0.0
        %1133 = vst [vmem:[%s269] sm:$0x8] %v1132
        %s1134 = sand.u32 %s181, 1
        %s1135 = scalar_lea.sflag [#allocation3], %s1134
        %s1136 = sand.u32 %s181, 1
        %s1137 = smul.addr %s1136, 4
        %s1138 = scalar_lea.vmem [#allocation2], %s1137
        // Predicated region
        $region49: #{cnc_renderer_forward_packed.1} parent=47 // pred_check
          %p1139 = pneg %p191
        $region50: #{cnc_renderer_forward_packed.1} parent=47 // pred_check_branch
          %1141 = sbr.rel (%p1139) target = $region52
        $region51: #{cnc_renderer_forward_packed.1} parent=47 // pred_region
          %s1143 = ssub.s32 64, 64
          %1144 = vsyncadd %s1135, %s1143
          %s1145 = smul.addr %s21, 64
          %s1146 = scalar_lea.hbm %s7, %s1145
          %s1148 = sshll.u32 %s1138, 4
          %s1149 = int_to_ptr.vmem [resolvable:$true] %s1148
          %1151 = dma.vmem_to_hbm [thread:$0]  %s1149, 64, %s1146, %s1135
        $region52: #{cnc_renderer_forward_packed.1} parent=47 // pred_fallthru
          _
      $region48: #{cnc_renderer_forward_packed.1} parent=5 // pred_fallthru
        _
      %p1152 = scmp.le.s32.totalorder 2, %s16
      // Predicated region
      $region53: #{cnc_renderer_forward_packed.1} parent=5 // pred_check
        %p1153 = pneg %p1152
      $region54: #{cnc_renderer_forward_packed.1} parent=5 // pred_check_branch
        %1155 = sbr.rel (%p1153) target = $region56
      $region55: #{cnc_renderer_forward_packed.1} parent=5 // pred_region
        %s1156 = ssub.s32 %s16, 2
        // Predicated region
        $region57: #{cnc_renderer_forward_packed.1} parent=55 // pred_check
          %p1157 = pneg %p197
        $region58: #{cnc_renderer_forward_packed.1} parent=55 // pred_check_branch
          %1159 = sbr.rel (%p1157) target = $region60
        $region59: #{cnc_renderer_forward_packed.1} parent=55 // pred_region
          %s1160 = sand.u32 %s182, 1
          %s1161 = scalar_lea.sflag [#allocation3], %s1160
          %s1162 = sand.u32 %s182, 1
          %s1163 = smul.addr %s1162, 4
          %s1164 = scalar_lea.vmem [#allocation2], %s1163
          %1165 = dma.done %s1161, 64
        $region60: #{cnc_renderer_forward_packed.1} parent=55 // pred_fallthru
          _
      $region56: #{cnc_renderer_forward_packed.1} parent=5 // pred_fallthru
        _
    $region6: #{cnc_renderer_forward_packed.1} parent=1 // loop_footer
      %s20 = sadd.s32 1, %s16
    $region7: #{cnc_renderer_forward_packed.1} parent=1 // loop_footer_branch
      %15 = sbr.rel target = $region3
    $region8: #{cnc_renderer_forward_packed.1} parent=1 // loop_exit
      _
    %1166 = vsyncpa [#allocation3], 1
    %s1167 = scalar_lea.sflag [#allocation3], 1
    %1168 = vsyncpa %s1167, 1

</llo_original>
